<compile_context>
chip_gen: v5e
topology: v5e:2x2
jax: 0.10.0
libtpu: 0.0.40
codegen_flags: <defaults>
</compile_context>

<pallas_src>
from functools import partial

import jax
import jax.numpy as jnp
from jax import lax
from jax.experimental import pallas as pl
from jax.experimental.pallas import tpu as pltpu


def _round_up(x, m):
    return (x + m - 1) // m * m


_COORD_PAD = 8  # pad the xyz coordinate axis 3 -> 8 (zero coords are harmless)


def _vmem_limit_bytes():
    """64 MiB scoped VMEM on 128-MiB chips (v5e/v6e), 32 MiB otherwise (v7x)."""
    try:
        cap = pltpu.get_tpu_info().vmem_capacity_bytes
    except Exception:
        return 32 * 1024 * 1024
    if cap >= 100 * 1024 * 1024:
        return 64 * 1024 * 1024
    return 32 * 1024 * 1024


# ----------------------------------------------------------------------------
# Kernel 1: feats1 = relu(points1 @ W1_folded + b1_folded)     (BN folded in)
#   gridded over row tiles of the flattened [B*N1, dim1] input; weights resident.
# ----------------------------------------------------------------------------
def _linear_relu_kernel(x_ref, wT_ref, b_ref, o_ref):
    x = x_ref[...].astype(jnp.bfloat16)                       # [TM, Din]  bf16 MXU feed
    y = jnp.dot(x, wT_ref[...], preferred_element_type=jnp.float32)  # [TM, Dout] f32 acc
    y = jnp.maximum(y + b_ref[...], 0.0)
    o_ref[...] = y.astype(o_ref.dtype)


def linear_relu(x, wT_bf16, b, *, out_dtype=jnp.bfloat16, row_tile=512):
    B, N, Din = x.shape
    Dout = wT_bf16.shape[1]                                   # already padded to x128
    rows = B * N
    x2d = x.reshape(rows, Din)

    tm = min(row_tile, _round_up(rows, 8))
    rows_p = _round_up(rows, tm)
    if rows_p != rows:
        x2d = jnp.pad(x2d, ((0, rows_p - rows), (0, 0)))

    out = pl.pallas_call(
        _linear_relu_kernel,
        out_shape=jax.ShapeDtypeStruct((rows_p, Dout), out_dtype),
        grid=(rows_p // tm,),
        in_specs=[
            pl.BlockSpec((tm, Din), lambda i: (i, 0)),
            # Resident weight / bias: constant block index -> single buffer.
            pl.BlockSpec((Din, Dout), lambda i: (0, 0), pipeline_mode=pl.Buffered(1)),
            pl.BlockSpec((1, Dout), lambda i: (0, 0), pipeline_mode=pl.Buffered(1)),
        ],
        out_specs=pl.BlockSpec((tm, Dout), lambda i: (i, 0)),
        compiler_params=pltpu.CompilerParams(
            dimension_semantics=("parallel",),
            vmem_limit_bytes=_vmem_limit_bytes(),
        ),
    )(x2d, wT_bf16, b)
    return out[:rows].reshape(B, N, Dout)


# ----------------------------------------------------------------------------
# Kernel 2 (fused): for each flattened (batch, N2-tile) grid step:
#   feats2 = relu(points2 @ W2_folded + b2_folded)
#   3-NN inverse-distance interpolation of feats1 (at xyz1) onto xyz2
#   out = interp + feats2
# ----------------------------------------------------------------------------
def _interp_fc2_add_kernel(x1T_ref, x2_ref, f1_ref, p2_ref, w2_ref, b2_ref, o_ref,
                           *, idx_mask):
    # --- fused fc2 branch (BN folded into W2/b2) ---
    p2 = p2_ref[0].astype(jnp.bfloat16)                       # [TN2, Din2]
    f2 = jnp.dot(p2, w2_ref[...], preferred_element_type=jnp.float32)
    f2 = jnp.maximum(f2 + b2_ref[...], 0.0)                   # [TN2, C]

    # --- squared pairwise distances: |x2|^2 + |x1|^2 - 2 x2.x1  (cross term on MXU)
    x1T = x1T_ref[0]                                          # [8, N1] coord-major (coords 3..7 are 0)
    x2 = x2_ref[0]                                            # [TN2, 8]
    x1sq = jnp.sum(x1T * x1T, axis=0, keepdims=True)          # [1, N1]
    x2sq = jnp.sum(x2 * x2, axis=1, keepdims=True)            # [TN2, 1]
    cross = jnp.dot(x2, x1T, preferred_element_type=jnp.float32)   # [TN2, N1]
    d = jnp.maximum(x2sq + x1sq - 2.0 * cross, 0.0)           # [TN2, N1], >= 0

    N1 = x1T.shape[1]
    TN2 = d.shape[0]

    # Packed sortable key: distance bits (nonnegative f32 -> bit-order == value-order)
    # with the low `idx_bits` mantissa bits replaced by the lane index.  One XLU min
    # per neighbor gives both the (approximate) min distance and a unique winner.
    iota = lax.broadcasted_iota(jnp.int32, (TN2, N1), 1)
    key = pltpu.bitcast(
        (pltpu.bitcast(d, jnp.int32) & jnp.int32(~idx_mask)) | iota, jnp.float32)

    wmat = jnp.zeros((TN2, N1), jnp.float32)
    wsum = jnp.zeros((TN2, 1), jnp.float32)
    for _ in range(3):                                        # 3 nearest neighbors
        kmin = jnp.min(key, axis=-1, keepdims=True)           # [TN2,1] single XLU reduce
        sel = key == kmin                                     # exactly one lane per row
        wk = pl.reciprocal(kmin + 1e-8, approx=True)          # kmin ~= dmin (EUP)
        wsum = wsum + wk
        wmat = wmat + jnp.where(sel, wk, 0.0)
        key = jnp.where(sel, jnp.float32(jnp.inf), key)       # drop chosen neighbor

    wmat = wmat * (1.0 / wsum)                                # exact normalization ([TN2,1]-wide)
    f1 = f1_ref[0]                                            # [N1, C] (bf16)
    interp = jnp.dot(wmat.astype(jnp.bfloat16), f1,
                     preferred_element_type=jnp.float32)      # [TN2, C] on MXU
    o_ref[0] = (interp + f2).astype(o_ref.dtype)


def interp_fc2_add(xyz1, xyz2, feats1, points2, w2T_bf16, b2, *,
                   n2_tile=256, out_dtype=jnp.float32):
    B, N1, _ = xyz1.shape
    _, N2, _ = xyz2.shape
    Din2 = points2.shape[-1]
    C = feats1.shape[-1]                                      # padded to x128
    assert N1 >= 3, "3-NN interpolation requires at least 3 coarse points"

    # coordinate-major coarse coords, coord axis zero-padded 3 -> 8
    xyz1T = jnp.transpose(xyz1, (0, 2, 1))                    # [B, 3, N1]
    xyz1T = jnp.pad(xyz1T, ((0, 0), (0, _COORD_PAD - 3), (0, 0)))  # [B, 8, N1]

    # Cap tn2 so the ~4 live [tn2, N1] 4-byte temporaries stay under ~8 MiB
    # (keeps kernel 2 inside v7x's smaller VMEM for large N1; on v5e/v6e it is
    #  simply a no-op until N1 ~ 4K).
    tn2 = min(n2_tile, _round_up(N2, 8))
    budget = 8 * 1024 * 1024
    cap = max(8, (budget // (max(N1, 1) * 16)) // 8 * 8)
    tn2 = max(8, min(tn2, cap))
    N2p = _round_up(N2, tn2)
    nt = N2p // tn2

    xyz2p = jnp.pad(xyz2, ((0, 0), (0, N2p - N2), (0, _COORD_PAD - 3)))  # [B, N2p, 8]
    points2p = jnp.pad(points2, ((0, 0), (0, N2p - N2), (0, 0)))         # [B, N2p, Din2]

    idx_bits = max(1, (N1 - 1).bit_length())
    idx_mask = (1 << idx_bits) - 1
    kernel = partial(_interp_fc2_add_kernel, idx_mask=idx_mask)

    out = pl.pallas_call(
        kernel,
        out_shape=jax.ShapeDtypeStruct((B, N2p, C), out_dtype),
        # Single flattened parallel axis: keeps both TensorCores busy on v7x even
        # when B is 1-2.
        grid=(B * nt,),
        in_specs=[
            # Resident / slowly-varying blocks: single buffer (VMEM savings, esp. feats1).
            pl.BlockSpec((1, _COORD_PAD, N1), lambda i: (i // nt, 0, 0),
                         pipeline_mode=pl.Buffered(1)),
            pl.BlockSpec((1, tn2, _COORD_PAD), lambda i: (i // nt, i % nt, 0)),
            pl.BlockSpec((1, N1, C), lambda i: (i // nt, 0, 0),
                         pipeline_mode=pl.Buffered(1)),
            pl.BlockSpec((1, tn2, Din2), lambda i: (i // nt, i % nt, 0)),
            pl.BlockSpec((Din2, C), lambda i: (0, 0), pipeline_mode=pl.Buffered(1)),
            pl.BlockSpec((1, C), lambda i: (0, 0), pipeline_mode=pl.Buffered(1)),
        ],
        out_specs=pl.BlockSpec((1, tn2, C), lambda i: (i // nt, i % nt, 0)),
        compiler_params=pltpu.CompilerParams(
            dimension_semantics=("parallel",),
            vmem_limit_bytes=_vmem_limit_bytes(),
        ),
    )(xyz1T, xyz2p, feats1, points2p, w2T_bf16, b2)
    return out[:, :N2, :]


# ----------------------------------------------------------------------------
# Module wrapper / params
# ----------------------------------------------------------------------------
def make_params(key, dim1, dim2, dim_out, eps=1e-5):
    k1, k2, k3, k4 = jax.random.split(key, 4)
    # Linear weights (PyTorch shape [Dout, Din]) stored pre-transposed [Din, Dout]
    w1T = jax.random.normal(k1, (dim1, dim_out), jnp.float32) * 0.02
    b1 = jax.random.normal(k2, (1, dim_out), jnp.float32) * 0.02
    w2T = jax.random.normal(k3, (dim2, dim_out), jnp.float32) * 0.02
    b2 = jax.random.normal(k4, (1, dim_out), jnp.float32) * 0.02
    # BatchNorm1d defaults in eval mode: gamma=1, beta=0, running_mean=0, running_var=1
    gamma = jnp.ones((1, dim_out), jnp.float32)
    beta = jnp.zeros((1, dim_out), jnp.float32)
    mean = jnp.zeros((1, dim_out), jnp.float32)
    var = jnp.ones((1, dim_out), jnp.float32)
    scale = gamma / jnp.sqrt(var + eps)
    shift = beta - mean * scale
    # Fold BN affine into W / b on the host.
    w1T_f = w1T * scale
    b1_f = b1 * scale + shift
    w2T_f = w2T * scale
    b2_f = b2 * scale + shift
    # Pad the output-channel axis to a multiple of 128 for lane-dense stores and a
    # full MXU N dimension; padded columns are zero (ReLU(0) = 0) and sliced off
    # at the end of the forward pass.
    Cp = _round_up(dim_out, 128)
    pad = Cp - dim_out
    w1T_p = jnp.pad(w1T_f, ((0, 0), (0, pad)))
    b1_p = jnp.pad(b1_f, ((0, 0), (0, pad)))
    w2T_p = jnp.pad(w2T_f, ((0, 0), (0, pad)))
    b2_p = jnp.pad(b2_f, ((0, 0), (0, pad)))
    return dict(
        dim_out=dim_out,
        w1T=w1T_p.astype(jnp.bfloat16), b1=b1_p,
        w2T=w2T_p.astype(jnp.bfloat16), b2=b2_p,
        # unpadded f32 copies for the pure-JAX reference
        w1T_f32=w1T_f, b1_f32=b1_f, w2T_f32=w2T_f, b2_f32=b2_f,
    )


def transition_up(xyz1, points1, xyz2, points2, p):
    feats1 = linear_relu(points1, p["w1T"], p["b1"])                        # [B,N1,Cp] bf16
    out = interp_fc2_add(xyz1, xyz2, feats1, points2, p["w2T"], p["b2"])    # [B,N2,Cp] f32
    return out[..., : p["dim_out"]]


# ----------------------------------------------------------------------------
# Pure-JAX f32 reference for correctness check
# ----------------------------------------------------------------------------
def _ref_forward(xyz1, points1, xyz2, points2, p):
    def lin(x, wT, b):
        return jnp.maximum(x @ wT + b, 0.0)

    feats1 = lin(points1, p["w1T_f32"], p["b1_f32"])
    feats2 = lin(points2, p["w2T_f32"], p["b2_f32"])
    d = jnp.sum((xyz2[:, :, None, :] - xyz1[:, None, :, :]) ** 2, axis=-1)  # [B,N2,N1]
    negd, idx = lax.top_k(-d, 3)
    dist = -negd
    w = 1.0 / (dist + 1e-8)
    w = w / jnp.sum(w, axis=-1, keepdims=True)
    gathered = jnp.take_along_axis(feats1[:, None, :, :], idx[..., None], axis=2)
    interp = jnp.sum(gathered * w[..., None], axis=2)
    return interp + feats2


if __name__ == "__main__":
    B, N1, N2 = 2, 8, 16
    dim1, dim2, dim_out = 32, 16, 32

    key = jax.random.PRNGKey(0)
    kx1, kp1, kx2, kp2, kparam = jax.random.split(key, 5)
    xyz1 = jax.random.normal(kx1, (B, N1, 3), jnp.float32)
    points1 = jax.random.normal(kp1, (B, N1, dim1), jnp.float32)
    xyz2 = jax.random.normal(kx2, (B, N2, 3), jnp.float32)
    points2 = jax.random.normal(kp2, (B, N2, dim2), jnp.float32)
    params = make_params(kparam, dim1, dim2, dim_out)

    out = transition_up(xyz1, points1, xyz2, points2, params)
    out = jax.block_until_ready(out)

    ref = _ref_forward(xyz1, points1, xyz2, points2, params)
    assert out.shape == (B, N2, dim_out)
    # bf16 MXU feeds + approx per-neighbor reciprocal -> loose tol vs f32 reference
    assert jnp.allclose(out, ref, atol=2e-2, rtol=2e-2), "mismatch vs reference"

    print("KERNEL_OK")
</pallas_src>

<mosaic_0001>
module attributes {stable_mosaic.version = 11 : i64} {
  func.func @_linear_relu_kernel(%arg0: i32, %arg1: memref<16x32xf32, #tpu.memory_space<vmem>>, %arg2: memref<32x128xbf16, #tpu.memory_space<vmem>>, %arg3: memref<1x128xf32, #tpu.memory_space<vmem>>, %arg4: memref<16x128xbf16, #tpu.memory_space<vmem>>) attributes {dimension_semantics = [#tpu.dimension_semantics<parallel>], iteration_bounds = array<i64: 1>, scalar_prefetch = 0 : i64, scratch_operands = 0 : i64, tpu.core_type = #tpu.core_type<tc>, window_params = [{transform_indices = @transform_0, window_bounds = array<i64: 16, 32>}, {pipeline_mode = #tpu.pipeline_mode<synchronous>, transform_indices = @transform_1, window_bounds = array<i64: 32, 128>}, {pipeline_mode = #tpu.pipeline_mode<synchronous>, transform_indices = @transform_2, window_bounds = array<i64: 1, 128>}, {transform_indices = @transform_3, window_bounds = array<i64: 16, 128>}]} {
    %c0 = arith.constant 0 : index
    %c0_0 = arith.constant 0 : index
    %0 = vector.load %arg1[%c0, %c0_0] : memref<16x32xf32, #tpu.memory_space<vmem>>, vector<16x32xf32>
    %1 = arith.truncf %0 : vector<16x32xf32> to vector<16x32xbf16>
    %c0_1 = arith.constant 0 : index
    %c0_2 = arith.constant 0 : index
    %2 = vector.load %arg2[%c0_1, %c0_2] : memref<32x128xbf16, #tpu.memory_space<vmem>>, vector<32x128xbf16>
    %cst = arith.constant dense<0.000000e+00> : vector<16x128xf32>
    %3 = tpu.matmul %1, %2, %cst {dimension_numbers = #tpu.dot_dimension_numbers<[1], [0], [0], [1], [0, 0, 1, 1], [], []>} : vector<16x32xbf16>, vector<32x128xbf16>, vector<16x128xf32> -> vector<16x128xf32>
    %c0_3 = arith.constant 0 : index
    %c0_4 = arith.constant 0 : index
    %4 = vector.load %arg3[%c0_3, %c0_4] : memref<1x128xf32, #tpu.memory_space<vmem>>, vector<1x128xf32>
    %5 = vector.broadcast %4 : vector<1x128xf32> to vector<16x128xf32>
    %6 = arith.addf %3, %5 : vector<16x128xf32>
    %cst_5 = arith.constant 0.000000e+00 : f32
    %7 = vector.broadcast %cst_5 : f32 to vector<16x128xf32>
    %8 = arith.maximumf %6, %7 : vector<16x128xf32>
    %9 = arith.truncf %8 : vector<16x128xf32> to vector<16x128xbf16>
    %c0_6 = arith.constant 0 : index
    %c0_7 = arith.constant 0 : index
    %10 = vector.load %arg4[%c0_6, %c0_7] : memref<16x128xbf16, #tpu.memory_space<vmem>>, vector<16x128xbf16>
    tpu.vector_store %arg4[%c0_6, %c0_7], %9 {strides = array<i32>} : memref<16x128xbf16, #tpu.memory_space<vmem>>, vector<16x128xbf16>,
    return
  }
  func.func @transform_0(%arg0: i32) -> (i32, i32) {
    %c0_i32 = arith.constant 0 : i32
    %c0_i32_0 = arith.constant 0 : i32
    return %arg0, %c0_i32 : i32, i32
  }
  func.func @transform_1(%arg0: i32) -> (i32, i32) {
    %c0_i32 = arith.constant 0 : i32
    %c0_i32_0 = arith.constant 0 : i32
    %c0_i32_1 = arith.constant 0 : i32
    return %c0_i32, %c0_i32_0 : i32, i32
  }
  func.func @transform_2(%arg0: i32) -> (i32, i32) {
    %c0_i32 = arith.constant 0 : i32
    %c0_i32_0 = arith.constant 0 : i32
    %c0_i32_1 = arith.constant 0 : i32
    return %c0_i32, %c0_i32_0 : i32, i32
  }
  func.func @transform_3(%arg0: i32) -> (i32, i32) {
    %c0_i32 = arith.constant 0 : i32
    %c0_i32_0 = arith.constant 0 : i32
    return %arg0, %c0_i32 : i32, i32
  }
}

</mosaic_0001>

<llo_original>
// kernel: tpu_custom_call.1
$region0: #{tpu_custom_call.1}
  #allocation0 [shape = 'u32[]', space=smem, size = 0x4, offset = 0x4, fixed_abs, tag = 'smem constant byte address 0x4 - core index']
  #allocation1 [shape = 'u32[72,128]{1,0:T(1,128)}', space=vmem, size = 0x9000, scoped, tag = 'internal scratch']
  %s0 = inlined_call_operand.hbm [shape: f32[16,32], index: 0, kind: input, shape index: {}]
  %s1 = inlined_call_operand.hbm [shape: bf16[32,128], index: 1, kind: input, shape index: {}]
  %s2 = inlined_call_operand.vmem [shape: f32[1,128], index: 2, kind: input, shape index: {}]
  %s3 = inlined_call_operand.hbm [shape: bf16[16,128], index: 3, kind: output, shape index: {}]
  %s4 = sld [smem:[#allocation0]]
  $region30: #{tpu_custom_call.1} parent=0
    _
  %s6 = ssub.s32 1, %s4
  %s7 = scalar_select 0, %s6, %s4
  $region1: #{tpu_custom_call.1} parent=0
    #allocation2 [shape = 'u8[8192]{0}', space=vmem, size = 0x2000, scoped, tag = 'input window, operand 0, single buffered']
    #allocation3 [shape = 's32[1]{0}', space=sflag, size = 0x4, scoped, tag = 'scoped memory for tpu_custom_call.1']
    #allocation4 [shape = 's32[1]{0}', space=sflag, size = 0x4, scoped, tag = 'scoped memory for tpu_custom_call.1']
    #allocation5 [shape = 'u8[8192]{0}', space=vmem, size = 0x2000, scoped, tag = 'input window, operand 1, single buffered']
    #allocation6 [shape = 's32[1]{0}', space=sflag, size = 0x4, scoped, tag = 'scoped memory for tpu_custom_call.1']
    #allocation7 [shape = 'u8[4096]{0}', space=vmem, size = 0x1000, scoped, tag = 'output window, operand 0, single buffered']
    %8 = vsyncpa [#allocation3], 0
    %9 = vsyncpa [#allocation6], 0
    %10 = vsyncpa [#allocation4], 0
    // Predicated region
    $region2: #{tpu_custom_call.1} parent=1 // pred_check
      _
    $region3: #{tpu_custom_call.1} parent=1 // pred_check_branch
      %12 = sbr.rel (0) target = $region5
    $region4: #{tpu_custom_call.1} parent=1 // pred_region
      %14 = vsyncadd [#allocation3], 0
      %s15 = sshll.u32 %s0, 4
      %s16 = int_to_ptr.hbm [resolvable:$true] %s15
      %s17 = sshll.u32 [#allocation2], 4
      %s18 = int_to_ptr.vmem [resolvable:$true] %s17
      %23 = dma.hbm_to_vmem [thread:$0]  %s16, 256, %s18, [#allocation3], 128, 128, 8
    $region5: #{tpu_custom_call.1} parent=1 // pred_fallthru
      _
    // Predicated region
    $region6: #{tpu_custom_call.1} parent=1 // pred_check
      _
    $region7: #{tpu_custom_call.1} parent=1 // pred_check_branch
      %25 = sbr.rel (0) target = $region9
    $region8: #{tpu_custom_call.1} parent=1 // pred_region
      %27 = vsyncadd [#allocation6], 0
      %s28 = sshll.u32 %s1, 4
      %s29 = int_to_ptr.hbm [resolvable:$true] %s28
      %s30 = sshll.u32 [#allocation5], 4
      %s31 = int_to_ptr.vmem [resolvable:$true] %s30
      %36 = dma.hbm_to_vmem [thread:$0]  %s29, 256, %s31, [#allocation6], 64, 64, 4
    $region9: #{tpu_custom_call.1} parent=1 // pred_fallthru
      _
    // Predicated region
    $region10: #{tpu_custom_call.1} parent=1 // pred_check
      _
    $region11: #{tpu_custom_call.1} parent=1 // pred_check_branch
      %38 = sbr.rel (0) target = $region13
    $region12: #{tpu_custom_call.1} parent=1 // pred_region
      _
    $region13: #{tpu_custom_call.1} parent=1 // pred_fallthru
      _
    // Predicated region
    $region14: #{tpu_custom_call.1} parent=1 // pred_check
      _
    $region15: #{tpu_custom_call.1} parent=1 // pred_check_branch
      %40 = sbr.rel (0) target = $region17
    $region16: #{tpu_custom_call.1} parent=1 // pred_region
      %42 = dma.done [#allocation3], 256
    $region17: #{tpu_custom_call.1} parent=1 // pred_fallthru
      _
    // Predicated region
    $region18: #{tpu_custom_call.1} parent=1 // pred_check
      _
    $region19: #{tpu_custom_call.1} parent=1 // pred_check_branch
      %44 = sbr.rel (0) target = $region21
    $region20: #{tpu_custom_call.1} parent=1 // pred_region
      %46 = dma.done [#allocation6], 256
    $region21: #{tpu_custom_call.1} parent=1 // pred_fallthru
      _
    %v48 = vld [vmem:[#allocation2] sm:$0xff]
    %v49 = vld [vmem:[#allocation2 + $0x8] sm:$0xff]
    %v50 = vpack.c.bf16 %v49, %v48
    %v51 = vld [vmem:[#allocation5] sm:$0xf]
    %v52 = vld [vmem:[#allocation5 + $0x4] sm:$0xf]
    %v53 = vld [vmem:[#allocation5 + $0x8] sm:$0xf]
    %v54 = vld [vmem:[#allocation5 + $0xc] sm:$0xf]
    %v55 = vld [vmem:[%s2] sm:$0x1]
    %v57 = vperm.slane %v55, 0
    %v63 = vunpack.c.l.b16 %v51
    %v64 = vunpack.c.l.b16 %v52
    %v65 = vunpack.c.l.b16 %v53
    %v66 = vunpack.c.l.b16 %v54
    %v67 = vpack.c.b16 %v64, %v63
    %v68 = vpack.c.b16 %v66, %v65
    %vm71 = vcmask 261120
    %v73 = vsel %vm71, %v50, 0
    %75 = vmatpush.bf16.msra.mxu0 0
    %76 = vmatpush.bf16.msra.mxu0 0
    %77 = vmatpush.bf16.msra.mxu0 0
    %78 = vmatpush.bf16.msra.mxu0 0
    %79 = vmatpush.bf16.msra.mxu0 0
    %80 = vmatpush.bf16.msra.mxu0 0
    %81 = vmatpush.bf16.msra.mxu0 %v68
    %82 = vmatpush.bf16.msra.mxu0 %v67
    %83 = vmatmul.bf16.gmra.mxu0 %v73
    %v84 = vpop.f32.mrf.mxu0
    %v85 = vadd.f32 %v57, %v84
    %v86 = vpop.f32.mrf.mxu0
    %v87 = vadd.f32 %v57, %v86
    %88 = vdwg.mxu0
    %v89 = vmax.f32 %v85, 0.0
    %v90 = vmax.f32 %v87, 0.0
    %v91 = vpack.c.bf16 %v89, %v89
    %v92 = vpack.c.bf16 %v90, %v90
    %93 = vst [vmem:[#allocation7] sm:$0xf] %v91
    %94 = vst [vmem:[#allocation7 + $0x4] sm:$0xf] %v92
    // Predicated region
    $region22: #{tpu_custom_call.1} parent=1 // pred_check
      _
    $region23: #{tpu_custom_call.1} parent=1 // pred_check_branch
      %96 = sbr.rel (0) target = $region25
    $region24: #{tpu_custom_call.1} parent=1 // pred_region
      %98 = vsyncadd [#allocation4], 0
      %s99 = sshll.u32 [#allocation7], 4
      %s100 = int_to_ptr.vmem [resolvable:$true] %s99
      %s101 = sshll.u32 %s3, 4
      %s102 = int_to_ptr.hbm [resolvable:$true] %s101
      %107 = dma.vmem_to_hbm [thread:$0]  %s100, 128, %s102, [#allocation4], 64, 64, 4
    $region25: #{tpu_custom_call.1} parent=1 // pred_fallthru
      _
    // Predicated region
    $region26: #{tpu_custom_call.1} parent=1 // pred_check
      _
    $region27: #{tpu_custom_call.1} parent=1 // pred_check_branch
      %109 = sbr.rel (0) target = $region29
    $region28: #{tpu_custom_call.1} parent=1 // pred_region
      %111 = dma.done [#allocation4], 128
    $region29: #{tpu_custom_call.1} parent=1 // pred_fallthru
      _
    %112 = vsyncpa [#allocation3], 1
    %113 = vsyncpa [#allocation6], 1
    %114 = vsyncpa [#allocation4], 1

</llo_original>
